<compile_context>
chip_gen: v7x
topology: tpu7x:2x2x1
jax: 0.10.0
libtpu: 0.0.40
codegen_flags: <defaults>
</compile_context>

<pallas_src>
import jax
import jax.numpy as jnp
from jax.experimental import pallas as pl
from jax.experimental.pallas import tpu as pltpu


def _round_up(x, m):
    return ((x + m - 1) // m) * m


def _discriminator_kernel(x_ref, w1_ref, b1_ref, w2_ref, b2_ref, o_ref):
    # fc1: [TB, size](bf16) @ [size, Hp](bf16) -> f32 accumulate on the MXU.
    h = jnp.dot(x_ref[...], w1_ref[...], preferred_element_type=jnp.float32)
    h = h + b1_ref[...]                                    # [TB, Hp] f32
    # fc2 (output width 1): VPU multiply + XLU lane reduce keeps the MXU free
    # and avoids a nearly-empty systolic-array pass.
    y = jnp.sum(h * w2_ref[...], axis=-1, keepdims=True)   # [TB, 1] f32
    y = y + b2_ref[0, 0]                                    # scalar bias from SMEM
    # sigmoid = 1 / (1 + exp(-y)): exp and approx reciprocal both ride the EUP.
    o_ref[...] = pl.reciprocal(1.0 + jnp.exp(-y), approx=True)


def discriminator_forward(x, w1_t, b1, w2_t, b2, *, tile_b=256):
    """Forward pass of Discriminator.

    x:    [B, H, W] float32 (flattened to [B, size] like torch's .view(B, -1))
    w1_t: [size, 100]  (transposed nn.Linear weight)
    b1:   [100]
    w2_t: [100, 1]     (transposed nn.Linear weight)
    b2:   [1]
    Returns [B, 1] float32 sigmoid probabilities.
    """
    B = x.shape[0]
    size, hidden = w1_t.shape
    x_flat = x.reshape(B, size)

    # ---- one-time layout prep (cheap wrapper ops) ----
    hidden_p = _round_up(hidden, 128)                      # 100 -> 128 (lane-dense)
    w1_p = jnp.pad(w1_t, ((0, 0), (0, hidden_p - hidden))).astype(jnp.bfloat16)
    b1_p = jnp.pad(b1, (0, hidden_p - hidden)).reshape(1, hidden_p).astype(jnp.float32)
    w2_row = jnp.pad(
        w2_t.reshape(1, hidden), ((0, 0), (0, hidden_p - hidden))
    ).astype(jnp.float32)
    b2_2d = b2.reshape(1, 1).astype(jnp.float32)

    # ---- batch tiling: grid over B, weights resident across grid steps ----
    tile_b = min(tile_b, _round_up(B, 8))                  # small-batch friendly
    b_pad = _round_up(B, tile_b)
    x_bf = x_flat.astype(jnp.bfloat16)                     # bf16 fc1 input (f32 acc)
    if b_pad != B:
        x_bf = jnp.pad(x_bf, ((0, b_pad - B), (0, 0)))

    grid = (b_pad // tile_b,)

    out = pl.pallas_call(
        _discriminator_kernel,
        out_shape=jax.ShapeDtypeStruct((b_pad, 1), jnp.float32),
        grid=grid,
        in_specs=[
            pl.BlockSpec((tile_b, size), lambda i: (i, 0)),    # x tile (pipelined)
            pl.BlockSpec((size, hidden_p), lambda i: (0, 0)),  # w1 (VMEM-resident)
            pl.BlockSpec((1, hidden_p), lambda i: (0, 0)),     # b1 (VMEM-resident)
            pl.BlockSpec((1, hidden_p), lambda i: (0, 0)),     # w2 row (resident)
            pl.BlockSpec(memory_space=pltpu.SMEM),             # b2 scalar in SMEM
        ],
        # TODO(synk): if the (TILE_B, 1) masked store ever shows up in the
        # bundle dump, switch to a lane-dense (1, TILE_B) output + reshape.
        out_specs=pl.BlockSpec((tile_b, 1), lambda i: (i, 0)),
        compiler_params=pltpu.CompilerParams(
            dimension_semantics=("parallel",),                 # megacore on v7x
        ),
    )(x_bf, w1_p, b1_p, w2_row, b2_2d)
    return out[:B]


def init_params(key, size, hidden=100, out=1):
    """Deterministic parameter init matching nn.Linear shapes (transposed)."""
    k1, k2, k3, k4 = jax.random.split(key, 4)
    bound1 = 1.0 / jnp.sqrt(size)
    bound2 = 1.0 / jnp.sqrt(hidden)
    w1_t = jax.random.uniform(k1, (size, hidden), jnp.float32, -bound1, bound1)
    b1 = jax.random.uniform(k2, (hidden,), jnp.float32, -bound1, bound1)
    w2_t = jax.random.uniform(k3, (hidden, out), jnp.float32, -bound2, bound2)
    b2 = jax.random.uniform(k4, (out,), jnp.float32, -bound2, bound2)
    return w1_t, b1, w2_t, b2


if __name__ == "__main__":
    # Discriminator(dim=(16, 16)) -> size = 256
    H, W = 16, 16
    B = 2
    size = H * W

    key = jax.random.PRNGKey(0)
    kx, kp = jax.random.split(key)
    x = jax.random.normal(kx, (B, H, W), jnp.float32)
    w1_t, b1, w2_t, b2 = init_params(kp, size)

    out = discriminator_forward(x, w1_t, b1, w2_t, b2)
    out = jax.block_until_ready(out)
    assert out.shape == (B, 1)

    # Reference with identical precision policy (bf16 fc1 inputs, f32 accum).
    x_flat = x.reshape(B, -1)
    h_ref = jnp.dot(
        x_flat.astype(jnp.bfloat16), w1_t.astype(jnp.bfloat16),
        preferred_element_type=jnp.float32,
    ) + b1
    ref = jax.nn.sigmoid(h_ref @ w2_t + b2)
    assert jnp.allclose(out, ref, atol=2e-3), "mismatch vs bf16-matched reference"

    # Loose check against the full-f32 PyTorch-equivalent math.
    ref_f32 = jax.nn.sigmoid((x_flat @ w1_t + b1) @ w2_t + b2)
    assert jnp.allclose(out, ref_f32, atol=5e-2), "mismatch vs f32 reference"

    print("KERNEL_OK")
</pallas_src>

<mosaic_0001>
module attributes {stable_mosaic.version = 11 : i64} {
  func.func @_discriminator_kernel(%arg0: i32, %arg1: memref<8x256xbf16, #tpu.memory_space<vmem>>, %arg2: memref<256x128xbf16, #tpu.memory_space<vmem>>, %arg3: memref<1x128xf32, #tpu.memory_space<vmem>>, %arg4: memref<1x128xf32, #tpu.memory_space<vmem>>, %arg5: memref<1x1xf32, #tpu.memory_space<smem>>, %arg6: memref<8x1xf32, #tpu.memory_space<vmem>>) attributes {dimension_semantics = [#tpu.dimension_semantics<parallel>], iteration_bounds = array<i64: 1>, scalar_prefetch = 0 : i64, scratch_operands = 0 : i64, tpu.core_type = #tpu.core_type<tc>, window_params = [{transform_indices = @transform_0, window_bounds = array<i64: 8, 256>}, {pipeline_mode = #tpu.pipeline_mode<synchronous>, transform_indices = @transform_1, window_bounds = array<i64: 256, 128>}, {pipeline_mode = #tpu.pipeline_mode<synchronous>, transform_indices = @transform_2, window_bounds = array<i64: 1, 128>}, {pipeline_mode = #tpu.pipeline_mode<synchronous>, transform_indices = @transform_3, window_bounds = array<i64: 1, 128>}, {transform_indices = @transform_4, window_bounds = array<i64: 1, 1>}, {transform_indices = @transform_5, window_bounds = array<i64: 8, 1>}]} {
    %c0 = arith.constant 0 : index
    %c0_0 = arith.constant 0 : index
    %0 = vector.load %arg1[%c0, %c0_0] : memref<8x256xbf16, #tpu.memory_space<vmem>>, vector<8x256xbf16>
    %c0_1 = arith.constant 0 : index
    %c0_2 = arith.constant 0 : index
    %1 = vector.load %arg2[%c0_1, %c0_2] : memref<256x128xbf16, #tpu.memory_space<vmem>>, vector<256x128xbf16>
    %cst = arith.constant dense<0.000000e+00> : vector<8x128xf32>
    %2 = tpu.matmul %0, %1, %cst {dimension_numbers = #tpu.dot_dimension_numbers<[1], [0], [0], [1], [0, 0, 1, 1], [], []>} : vector<8x256xbf16>, vector<256x128xbf16>, vector<8x128xf32> -> vector<8x128xf32>
    %c0_3 = arith.constant 0 : index
    %c0_4 = arith.constant 0 : index
    %3 = vector.load %arg3[%c0_3, %c0_4] : memref<1x128xf32, #tpu.memory_space<vmem>>, vector<1x128xf32>
    %4 = vector.broadcast %3 : vector<1x128xf32> to vector<8x128xf32>
    %5 = arith.addf %2, %4 : vector<8x128xf32>
    %c0_5 = arith.constant 0 : index
    %c0_6 = arith.constant 0 : index
    %6 = vector.load %arg4[%c0_5, %c0_6] : memref<1x128xf32, #tpu.memory_space<vmem>>, vector<1x128xf32>
    %7 = vector.broadcast %6 : vector<1x128xf32> to vector<8x128xf32>
    %8 = arith.mulf %5, %7 : vector<8x128xf32>
    %cst_7 = arith.constant dense<0.000000e+00> : vector<8xf32>
    %9 = vector.multi_reduction <add>, %8, %cst_7 [1] : vector<8x128xf32> to vector<8xf32>
    %10 = vector.shape_cast %9 : vector<8xf32> to vector<8x1xf32>
    %c0_8 = arith.constant 0 : index
    %c0_9 = arith.constant 0 : index
    %11 = memref.load %arg5[%c0_8, %c0_9] : memref<1x1xf32, #tpu.memory_space<smem>>
    %12 = vector.broadcast %11 : f32 to vector<8x1xf32>
    %13 = arith.addf %10, %12 : vector<8x1xf32>
    %cst_10 = arith.constant 0.000000e+00 : f32
    %14 = vector.broadcast %cst_10 : f32 to vector<8x1xf32>
    %15 = arith.subf %14, %13 : vector<8x1xf32>
    %16 = math.exp %15 : vector<8x1xf32>
    %cst_11 = arith.constant 1.000000e+00 : f32
    %17 = vector.broadcast %cst_11 : f32 to vector<8x1xf32>
    %18 = arith.addf %17, %16 : vector<8x1xf32>
    %19 = tpu.reciprocal %18 {approx = true} : vector<8x1xf32> -> vector<8x1xf32>
    %c0_12 = arith.constant 0 : index
    %c0_13 = arith.constant 0 : index
    %20 = vector.load %arg6[%c0_12, %c0_13] : memref<8x1xf32, #tpu.memory_space<vmem>>, vector<8x1xf32>
    tpu.vector_store %arg6[%c0_12, %c0_13], %19 {strides = array<i32>} : memref<8x1xf32, #tpu.memory_space<vmem>>, vector<8x1xf32>,
    return
  }
  func.func @transform_0(%arg0: i32) -> (i32, i32) {
    %c0_i32 = arith.constant 0 : i32
    %c0_i32_0 = arith.constant 0 : i32
    return %arg0, %c0_i32 : i32, i32
  }
  func.func @transform_1(%arg0: i32) -> (i32, i32) {
    %c0_i32 = arith.constant 0 : i32
    %c0_i32_0 = arith.constant 0 : i32
    %c0_i32_1 = arith.constant 0 : i32
    return %c0_i32, %c0_i32_0 : i32, i32
  }
  func.func @transform_2(%arg0: i32) -> (i32, i32) {
    %c0_i32 = arith.constant 0 : i32
    %c0_i32_0 = arith.constant 0 : i32
    %c0_i32_1 = arith.constant 0 : i32
    return %c0_i32, %c0_i32_0 : i32, i32
  }
  func.func @transform_3(%arg0: i32) -> (i32, i32) {
    %c0_i32 = arith.constant 0 : i32
    %c0_i32_0 = arith.constant 0 : i32
    %c0_i32_1 = arith.constant 0 : i32
    return %c0_i32, %c0_i32_0 : i32, i32
  }
  func.func @transform_4(%arg0: i32) -> (i32, i32) {
    %c0_i32 = arith.constant 0 : i32
    %c0_i32_0 = arith.constant 0 : i32
    %c0_i32_1 = arith.constant 0 : i32
    return %c0_i32, %c0_i32_0 : i32, i32
  }
  func.func @transform_5(%arg0: i32) -> (i32, i32) {
    %c0_i32 = arith.constant 0 : i32
    %c0_i32_0 = arith.constant 0 : i32
    return %arg0, %c0_i32 : i32, i32
  }
}

</mosaic_0001>

<llo_original>
// kernel: tpu_custom_call.1
$region0: #{tpu_custom_call.1}
  #allocation0 [shape = 'u32[]', space=smem, size = 0x4, offset = 0x4, fixed_abs, tag = 'smem constant byte address 0x4 - core index']
  #allocation1 [shape = 'u32[144,128]{1,0:T(1,128)}', space=vmem, size = 0x12000, scoped, tag = 'internal scratch']
  #allocation2 [shape = 'f32[1,1]{1,0:T(1,128)S(6)}', space=smem, size = 0x200, scoped, tag = 'scoped memory for tpu_custom_call.1']
  %s0 = inlined_call_operand.hbm [shape: bf16[8,256], index: 0, kind: input, shape index: {}]
  %s1 = inlined_call_operand.hbm [shape: bf16[256,128], index: 1, kind: input, shape index: {}]
  %s2 = inlined_call_operand.vmem [shape: f32[1,128], index: 2, kind: input, shape index: {}]
  %s3 = inlined_call_operand.vmem [shape: f32[1,128], index: 3, kind: input, shape index: {}]
  %s4 = inlined_call_operand.<no memory space> [shape: f32[1,1], index: 4, kind: input, shape index: {}]
  %s5 = inlined_call_operand.vmem [shape: f32[8,1], index: 5, kind: output, shape index: {}]
  %s6 = sld [smem:[#allocation0]]
  $region38: #{tpu_custom_call.1} parent=0
    _
  %s8 = ssub.s32 1, %s6
  %s9 = scalar_select 0, %s8, %s6
  %10 = sst [smem:[#allocation2]] %s4
  $region1: #{tpu_custom_call.1} parent=0
    #allocation3 [shape = 'u8[4096]{0}', space=vmem, size = 0x1000, scoped, tag = 'input window, operand 0, single buffered']
    #allocation4 [shape = 's32[1]{0}', space=sflag, size = 0x4, scoped, tag = 'scoped memory for tpu_custom_call.1']
    #allocation5 [shape = 'u8[65536]{0}', space=vmem, size = 0x10000, scoped, tag = 'input window, operand 1, single buffered']
    #allocation6 [shape = 's32[1]{0}', space=sflag, size = 0x4, scoped, tag = 'scoped memory for tpu_custom_call.1']
    %11 = vsyncpa [#allocation4], 0
    %12 = vsyncpa [#allocation6], 0
    // Predicated region
    $region2: #{tpu_custom_call.1} parent=1 // pred_check
      _
    $region3: #{tpu_custom_call.1} parent=1 // pred_check_branch
      %14 = sbr.rel (0) target = $region5
    $region4: #{tpu_custom_call.1} parent=1 // pred_region
      %s16 = ssub.s32 128, 128
      %17 = vsyncadd [#allocation4], %s16
      %s19 = sshll.u32 [#allocation3], 4
      %s20 = int_to_ptr.vmem [resolvable:$true] %s19
      %22 = dma.hbm_to_vmem [thread:$0]  %s0, 128, %s20, [#allocation4]
    $region5: #{tpu_custom_call.1} parent=1 // pred_fallthru
      _
    // Predicated region
    $region6: #{tpu_custom_call.1} parent=1 // pred_check
      _
    $region7: #{tpu_custom_call.1} parent=1 // pred_check_branch
      %24 = sbr.rel (0) target = $region9
    $region8: #{tpu_custom_call.1} parent=1 // pred_region
      %s26 = ssub.s32 2048, 2048
      %27 = vsyncadd [#allocation6], %s26
      %s28 = sshll.u32 [#allocation5], 4
      %s29 = int_to_ptr.vmem [resolvable:$true] %s28
      %34 = dma.hbm_to_vmem [thread:$0]  %s1, 2048, %s29, [#allocation6], 64, 64, 4
    $region9: #{tpu_custom_call.1} parent=1 // pred_fallthru
      _
    // Predicated region
    $region10: #{tpu_custom_call.1} parent=1 // pred_check
      _
    $region11: #{tpu_custom_call.1} parent=1 // pred_check_branch
      %36 = sbr.rel (0) target = $region13
    $region12: #{tpu_custom_call.1} parent=1 // pred_region
      _
    $region13: #{tpu_custom_call.1} parent=1 // pred_fallthru
      _
    // Predicated region
    $region14: #{tpu_custom_call.1} parent=1 // pred_check
      _
    $region15: #{tpu_custom_call.1} parent=1 // pred_check_branch
      %38 = sbr.rel (0) target = $region17
    $region16: #{tpu_custom_call.1} parent=1 // pred_region
      _
    $region17: #{tpu_custom_call.1} parent=1 // pred_fallthru
      _
    // Predicated region
    $region18: #{tpu_custom_call.1} parent=1 // pred_check
      _
    $region19: #{tpu_custom_call.1} parent=1 // pred_check_branch
      %40 = sbr.rel (0) target = $region21
    $region20: #{tpu_custom_call.1} parent=1 // pred_region
      _
    $region21: #{tpu_custom_call.1} parent=1 // pred_fallthru
      _
    // Predicated region
    $region22: #{tpu_custom_call.1} parent=1 // pred_check
      _
    $region23: #{tpu_custom_call.1} parent=1 // pred_check_branch
      %42 = sbr.rel (0) target = $region25
    $region24: #{tpu_custom_call.1} parent=1 // pred_region
      %43 = dma.done [#allocation4], 128
    $region25: #{tpu_custom_call.1} parent=1 // pred_fallthru
      _
    // Predicated region
    $region26: #{tpu_custom_call.1} parent=1 // pred_check
      _
    $region27: #{tpu_custom_call.1} parent=1 // pred_check_branch
      %45 = sbr.rel (0) target = $region29
    $region28: #{tpu_custom_call.1} parent=1 // pred_region
      %46 = dma.done [#allocation6], 2048
    $region29: #{tpu_custom_call.1} parent=1 // pred_fallthru
      _
    %v48 = vld [vmem:[#allocation3] sm:$0xff]
    %v49 = vld [vmem:[#allocation5] sm:$0xf]
    %v50 = vld [vmem:[#allocation5 + $0x4] sm:$0xf]
    %v51 = vld [vmem:[#allocation5 + $0x8] sm:$0xf]
    %v52 = vld [vmem:[#allocation5 + $0xc] sm:$0xf]
    %v53 = vld [vmem:[#allocation5 + $0x10] sm:$0xf]
    %v54 = vld [vmem:[#allocation5 + $0x14] sm:$0xf]
    %v55 = vld [vmem:[#allocation5 + $0x18] sm:$0xf]
    %v56 = vld [vmem:[#allocation5 + $0x1c] sm:$0xf]
    %v57 = vld [vmem:[#allocation5 + $0x20] sm:$0xf]
    %v58 = vld [vmem:[#allocation5 + $0x24] sm:$0xf]
    %v59 = vld [vmem:[#allocation5 + $0x28] sm:$0xf]
    %v60 = vld [vmem:[#allocation5 + $0x2c] sm:$0xf]
    %v61 = vld [vmem:[#allocation5 + $0x30] sm:$0xf]
    %v62 = vld [vmem:[#allocation5 + $0x34] sm:$0xf]
    %v63 = vld [vmem:[#allocation5 + $0x38] sm:$0xf]
    %v64 = vld [vmem:[#allocation5 + $0x3c] sm:$0xf]
    %v65 = vld [vmem:[#allocation5 + $0x40] sm:$0xf]
    %v66 = vld [vmem:[#allocation5 + $0x44] sm:$0xf]
    %v67 = vld [vmem:[#allocation5 + $0x48] sm:$0xf]
    %v68 = vld [vmem:[#allocation5 + $0x4c] sm:$0xf]
    %v69 = vld [vmem:[#allocation5 + $0x50] sm:$0xf]
    %v70 = vld [vmem:[#allocation5 + $0x54] sm:$0xf]
    %v71 = vld [vmem:[#allocation5 + $0x58] sm:$0xf]
    %v72 = vld [vmem:[#allocation5 + $0x5c] sm:$0xf]
    %v73 = vld [vmem:[#allocation5 + $0x60] sm:$0xf]
    %v74 = vld [vmem:[#allocation5 + $0x64] sm:$0xf]
    %v75 = vld [vmem:[#allocation5 + $0x68] sm:$0xf]
    %v76 = vld [vmem:[#allocation5 + $0x6c] sm:$0xf]
    %v77 = vld [vmem:[#allocation5 + $0x70] sm:$0xf]
    %v78 = vld [vmem:[#allocation5 + $0x74] sm:$0xf]
    %v79 = vld [vmem:[#allocation5 + $0x78] sm:$0xf]
    %v80 = vld [vmem:[#allocation5 + $0x7c] sm:$0xf]
    %v81 = vld [vmem:[%s2] sm:$0x1]
    %v83 = vlaneseq
    %v84 = vshrl.u32 %v83, 7
    %v85 = vsub.s32 0, %v84
    %v86 = vrot.slane %v81, %v85
    %v89 = vunpack.c.l.b16 %v48
    %v90 = vunpack.c.h.b16 %v48
    %v91 = vpack.c.b16 %v89, %v89
    %v92 = vpack.c.b16 %v90, %v90
    %v127 = vunpack.c.l.b16 %v49
    %v128 = vunpack.c.l.b16 %v50
    %v129 = vunpack.c.l.b16 %v51
    %v130 = vunpack.c.l.b16 %v52
    %v131 = vunpack.c.l.b16 %v53
    %v132 = vunpack.c.l.b16 %v54
    %v133 = vunpack.c.l.b16 %v55
    %v134 = vunpack.c.l.b16 %v56
    %v135 = vunpack.c.l.b16 %v57
    %v136 = vunpack.c.l.b16 %v58
    %v137 = vunpack.c.l.b16 %v59
    %v138 = vunpack.c.l.b16 %v60
    %v139 = vunpack.c.l.b16 %v61
    %v140 = vunpack.c.l.b16 %v62
    %v141 = vunpack.c.l.b16 %v63
    %v142 = vunpack.c.l.b16 %v64
    %v143 = vunpack.c.l.b16 %v65
    %v144 = vunpack.c.l.b16 %v66
    %v145 = vunpack.c.l.b16 %v67
    %v146 = vunpack.c.l.b16 %v68
    %v147 = vunpack.c.l.b16 %v69
    %v148 = vunpack.c.l.b16 %v70
    %v149 = vunpack.c.l.b16 %v71
    %v150 = vunpack.c.l.b16 %v72
    %v151 = vunpack.c.l.b16 %v73
    %v152 = vunpack.c.l.b16 %v74
    %v153 = vunpack.c.l.b16 %v75
    %v154 = vunpack.c.l.b16 %v76
    %v155 = vunpack.c.l.b16 %v77
    %v156 = vunpack.c.l.b16 %v78
    %v157 = vunpack.c.l.b16 %v79
    %v158 = vunpack.c.l.b16 %v80
    %v159 = vpack.c.b16 %v128, %v127
    %v160 = vpack.c.b16 %v130, %v129
    %v161 = vpack.c.b16 %v132, %v131
    %v162 = vpack.c.b16 %v134, %v133
    %v163 = vpack.c.b16 %v136, %v135
    %v164 = vpack.c.b16 %v138, %v137
    %v165 = vpack.c.b16 %v140, %v139
    %v166 = vpack.c.b16 %v142, %v141
    %v167 = vpack.c.b16 %v144, %v143
    %v168 = vpack.c.b16 %v146, %v145
    %v169 = vpack.c.b16 %v148, %v147
    %v170 = vpack.c.b16 %v150, %v149
    %v171 = vpack.c.b16 %v152, %v151
    %v172 = vpack.c.b16 %v154, %v153
    %v173 = vpack.c.b16 %v156, %v155
    %v174 = vpack.c.b16 %v158, %v157
    %191 = vmatprep.subr.bf16.mxu0 0
    %192 = vmatpush1.bf16.msra.mxu0 %v159
    %193 = vmatprep.subr.bf16.mxu0 0
    %194 = vmatpush1.bf16.msra.mxu0 %v160
    %195 = vmatprep.subr.bf16.mxu0 0
    %196 = vmatpush1.bf16.msra.mxu0 %v161
    %197 = vmatprep.subr.bf16.mxu0 0
    %198 = vmatpush1.bf16.msra.mxu0 %v162
    %199 = vmatprep.subr.bf16.mxu0 0
    %200 = vmatpush1.bf16.msra.mxu0 %v163
    %201 = vmatprep.subr.bf16.mxu0 0
    %202 = vmatpush1.bf16.msra.mxu0 %v164
    %203 = vmatprep.subr.bf16.mxu0 0
    %204 = vmatpush1.bf16.msra.mxu0 %v165
    %205 = vmatprep.subr.bf16.mxu0 0
    %206 = vmatpush1.bf16.msra.mxu0 %v166
    %207 = vmatprep.subr.bf16.mxu0 0
    %208 = vmatpush1.bf16.msra.mxu0 %v167
    %209 = vmatprep.subr.bf16.mxu0 0
    %210 = vmatpush1.bf16.msra.mxu0 %v168
    %211 = vmatprep.subr.bf16.mxu0 0
    %212 = vmatpush1.bf16.msra.mxu0 %v169
    %213 = vmatprep.subr.bf16.mxu0 0
    %214 = vmatpush1.bf16.msra.mxu0 %v170
    %215 = vmatprep.subr.bf16.mxu0 0
    %216 = vmatpush1.bf16.msra.mxu0 %v171
    %217 = vmatprep.subr.bf16.mxu0 0
    %218 = vmatpush1.bf16.msra.mxu0 %v172
    %219 = vmatprep.subr.bf16.mxu0 0
    %220 = vmatpush1.bf16.msra.mxu0 %v173
    %221 = vmatprep.subr.bf16.mxu0 0
    %222 = vmatpush1.bf16.msra.mxu0 %v174
    %223 = vmatprep.mubr.bf16.mxu0 %v92
    %224 = vmatmul.mubr.bf16.gmra.mrb[0].mxu0 %v91
    %v225 = vpop.f32.mrb[0].mxu0
    %v226 = vadd.f32 %v86, %v225
    %v227 = vpop.f32.mrb[0].mxu0
    %v228 = vpop.f32.mrb[0].mxu0
    %v229 = vpop.f32.mrb[0].mxu0
    %230 = vdwg.mxu0
    %v231 = vld [vmem:[%s3] sm:$0x1]
    %v233 = vlaneseq
    %v234 = vshrl.u32 %v233, 7
    %v235 = vsub.s32 0, %v234
    %v236 = vrot.slane %v231, %v235
    %v238 = vmul.f32 %v226, %v236
    %239 = vadd.xlane.f32.xlu0 %v238
    %v240 = vpop.xlane.xlu0 %239
    %s241 = sld [smem:[#allocation2]]
    %v242 = vstv %s241
    %v243 = vadd.f32 %v240, %v242
    %v244 = vsub.f32 0.0, %v243
    %v245 = vmul.f32 %v244, 1.442695
    %v246 = vpow.pop %v245
    %v247 = vadd.f32 %v246, 1.0
    %v248 = vrcp.pop %v247
    %vm249 = vcmask 7168
    %250 = vst.msk [vmem:[%s5] sm:$0xff] %vm249, %v248
    // Predicated region
    $region30: #{tpu_custom_call.1} parent=1 // pred_check
      _
    $region31: #{tpu_custom_call.1} parent=1 // pred_check_branch
      %252 = sbr.rel (0) target = $region33
    $region32: #{tpu_custom_call.1} parent=1 // pred_region
      _
    $region33: #{tpu_custom_call.1} parent=1 // pred_fallthru
      _
    // Predicated region
    $region34: #{tpu_custom_call.1} parent=1 // pred_check
      _
    $region35: #{tpu_custom_call.1} parent=1 // pred_check_branch
      %254 = sbr.rel (0) target = $region37
    $region36: #{tpu_custom_call.1} parent=1 // pred_region
      _
    $region37: #{tpu_custom_call.1} parent=1 // pred_fallthru
      _
    %255 = vsyncpa [#allocation4], 1
    %256 = vsyncpa [#allocation6], 1

</llo_original>
